<compile_context>
chip_gen: v5e
topology: v5e:2x2
jax: 0.10.0
libtpu: 0.0.40
codegen_flags: <defaults>
</compile_context>

<pallas_src>
import functools
import re

import jax
import jax.numpy as jnp
from jax.experimental import pallas as pl
from jax.experimental.pallas import tpu as pltpu


# --------------------------------------------------------------------------- #
# Kernel
# --------------------------------------------------------------------------- #
def ritznet_kernel(x_ref, w_in_ref, b_in_ref, w_h_ref, b_h_ref,
                   w_out_ref, b_out_ref, o_ref, *, depth, d, dd,
                   ew_dtype, mxu_dtype):
    """One batch tile. x_ref: (d, tile_m) f32; o_ref: (dd, tile_m) f32.

    Weights/biases arrive pre-cast from the wrapper:
      w_in, b_in, b_h, w_out  -> ew_dtype  (elementwise path)
      w_h                     -> mxu_dtype (MXU operands)
      b_out                   -> f32       (tiny (dd,1) column)
    """
    # ---- Input layer: h = tanh(W_in @ x + b_in) -> (width, tile_m) ----------
    # d is tiny (2 for 2-D Poisson): a K=d matmul wastes a full MXU push, so
    # use d VPU broadcast-FMAs (outer-product form) instead.
    xb = x_ref[...].astype(ew_dtype)                  # (d, tile_m), d tiny
    z = w_in_ref[:, 0:1] * xb[0:1, :]
    for k in range(1, d):
        z = z + w_in_ref[:, k:k + 1] * xb[k:k + 1, :]
    h = jnp.tanh(z + b_in_ref[...])                   # ew_dtype everywhere

    # ---- Hidden layers: full-width MXU matmuls; bias/tanh in ew_dtype -------
    # depth is a static Python int -> loop unrolled at trace time.
    for l in range(depth):
        rhs = h if h.dtype == mxu_dtype else h.astype(mxu_dtype)
        zl = jnp.dot(w_h_ref[l], rhs, preferred_element_type=ew_dtype)
        h = jnp.tanh(zl + b_h_ref[l])

    # ---- Output layer (width -> dd, dd==1): VPU multiply + sublane reduce ---
    # Avoids an MXU pass that would fill only `dd` result rows; the resulting
    # (dd, tile_m) slab is lane-dense, so the store is unmasked.
    cols = [jnp.sum(h * w_out_ref[:, j:j + 1], axis=0, keepdims=True)
            for j in range(dd)]
    out = jnp.concatenate(cols, axis=0).astype(jnp.float32) + b_out_ref[...]
    o_ref[...] = out.astype(o_ref.dtype)


# --------------------------------------------------------------------------- #
# Wrapper / tiling policy
# --------------------------------------------------------------------------- #
def _round_up(n, m):
    return ((n + m - 1) // m) * m


def _tpu_generation():
    """Best-effort TPU generation (5, 6, 7, ...) from the device kind string."""
    try:
        kind = jax.devices()[0].device_kind.lower()
    except Exception:
        return 6
    m = re.search(r"v(\d+)", kind)
    if m:
        return int(m.group(1))
    m = re.search(r"(\d+)", kind)
    return int(m.group(1)) if m else 6


def _choose_tile_m(n, *, max_tile=16384, two_tc=False):
    """Largest lane-aligned tile up to max_tile; on 2-TC chips (v7x) prefer an
    even number of grid steps so both TensorCores get equal work."""
    n128 = _round_up(max(n, 1), 128)
    tile = min(n128, max_tile)
    if two_tc:
        steps = pl.cdiv(n128, tile)
        if steps == 1 and n128 > 128:
            tile = _round_up(n128 // 2, 128)          # split into 2 steps
        elif steps > 1 and steps % 2 == 1:
            tile = _round_up(pl.cdiv(n128, steps + 1), 128)  # make step count even
    return max(tile, 128)


def ritznet_forward_cols(x_cols, params, *, tile_m=None, ew_dtype=None,
                         mxu_dtype=jnp.bfloat16):
    """Core entry point: x_cols is (d, N) f32 (batch in lanes) -> (dd, N).

    Training loops should keep collocation points in this (d, N) layout so no
    per-call transpose/pad materialization is needed in the wrapper.
    """
    d, N = x_cols.shape
    width, d_w = params["w_in"].shape
    assert d_w == d
    depth = params["w_h"].shape[0]
    dd = params["w_out"].shape[1]

    gen = _tpu_generation()
    if ew_dtype is None:
        # bf16 VALU/EUP only exist on v6e/v7x; v5e must do elementwise in f32.
        ew_dtype = jnp.bfloat16 if gen >= 6 else jnp.float32
    if tile_m is None:
        tile_m = _choose_tile_m(N, two_tc=(gen >= 7))
    assert tile_m % 128 == 0, "tile_m must be lane-aligned (multiple of 128)"

    # Pad the batch (lane axis) up to a tile multiple; padded columns compute
    # harmless values and are sliced away afterwards (no masking needed).
    n_pad = _round_up(N, tile_m)
    if n_pad != N:
        x_cols = jnp.pad(x_cols, ((0, 0), (0, n_pad - N)))
    grid = (n_pad // tile_m,)

    # Pre-cast the (tiny, grid-resident) weights once in the wrapper so the
    # unrolled layer loop has zero in-kernel casts on the weight side.
    w_in = params["w_in"].astype(ew_dtype)
    b_in = params["b_in"].astype(ew_dtype)
    w_h = params["w_h"].astype(mxu_dtype)
    b_h = params["b_h"].astype(ew_dtype)
    w_out = params["w_out"].astype(ew_dtype)
    b_out = params["b_out"].astype(jnp.float32)

    kernel = functools.partial(ritznet_kernel, depth=depth, d=d, dd=dd,
                               ew_dtype=ew_dtype, mxu_dtype=mxu_dtype)

    # Weight/bias blocks use a constant block index, so the pipeliner keeps
    # them resident and does not re-DMA them every grid step.
    full2 = lambda i: (0, 0)
    full3 = lambda i: (0, 0, 0)

    flops = 2 * n_pad * (d * width + depth * width * width + width * dd)
    transcendentals = n_pad * width * (depth + 1)
    param_bytes = sum(int(a.size) * a.dtype.itemsize
                      for a in (w_in, b_in, w_h, b_h, w_out, b_out))
    bytes_accessed = (d + dd) * n_pad * 4 + param_bytes

    # Intermediates are only a few MiB even at tile_m=16384, but raise the
    # scoped-VMEM limit for large tiles so v5e's 16 MiB default never pinches.
    vmem_limit = (64 << 20) if tile_m >= 8192 else None

    out_cols = pl.pallas_call(
        kernel,
        out_shape=jax.ShapeDtypeStruct((dd, n_pad), jnp.float32),
        grid_spec=pltpu.PrefetchScalarGridSpec(
            num_scalar_prefetch=0,
            grid=grid,
            in_specs=[
                pl.BlockSpec((d, tile_m), lambda i: (0, i)),    # x tile (lanes = batch)
                pl.BlockSpec((width, d), full2),                # W_in   (out, in)
                pl.BlockSpec((width, 1), full2),                # b_in   (column)
                pl.BlockSpec((depth, width, width), full3),     # W_hid  (l, out, in)
                pl.BlockSpec((depth, width, 1), full3),         # b_hid  (columns)
                pl.BlockSpec((width, dd), full2),               # W_out  (in, out)
                pl.BlockSpec((dd, 1), full2),                   # b_out  (column)
            ],
            out_specs=pl.BlockSpec((dd, tile_m), lambda i: (0, i)),
        ),
        compiler_params=pltpu.CompilerParams(
            dimension_semantics=("parallel",),
            vmem_limit_bytes=vmem_limit,
        ),
        cost_estimate=pl.CostEstimate(
            flops=flops,
            transcendentals=transcendentals,
            bytes_accessed=bytes_accessed,
        ),
    )(x_cols, w_in, b_in, w_h, b_h, w_out, b_out)

    return out_cols[:, :N]                              # (dd, N)


def ritznet_forward(x, params, **kwargs):
    """Torch-layout convenience wrapper: x (N, d) -> (N, dd).

    For tight PINN training loops, prefer ritznet_forward_cols with the data
    kept in (d, N) layout to skip this per-call transpose.
    """
    N = x.shape[0]
    out_cols = ritznet_forward_cols(x.T, params, **kwargs)
    return out_cols.T[:N]                               # (N, dd)


# --------------------------------------------------------------------------- #
# Params / reference
# --------------------------------------------------------------------------- #
def init_params(key, d, width, depth, dd):
    """torch.nn.Linear-style init (uniform +-1/sqrt(fan_in)).
    Weights kept in torch (out, in) layout except w_out stored as (in, out)
    for the reduction-style output layer; biases stored as columns."""
    ks = jax.random.split(key, 2 * (depth + 2))
    ki = iter(ks)

    def lin(kw, kb, fan_in, fan_out):
        bound = 1.0 / jnp.sqrt(jnp.float32(fan_in))
        w = jax.random.uniform(kw, (fan_out, fan_in), jnp.float32, -bound, bound)
        b = jax.random.uniform(kb, (fan_out, 1), jnp.float32, -bound, bound)
        return w, b

    w_in, b_in = lin(next(ki), next(ki), d, width)        # (width, d), (width, 1)
    w_hs, b_hs = [], []
    for _ in range(depth):
        w, b = lin(next(ki), next(ki), width, width)
        w_hs.append(w)
        b_hs.append(b)
    w_out, b_out = lin(next(ki), next(ki), width, dd)     # (dd, width), (dd, 1)
    return {
        "w_in": w_in, "b_in": b_in,
        "w_h": jnp.stack(w_hs, axis=0),                   # (depth, width, width)
        "b_h": jnp.stack(b_hs, axis=0),                   # (depth, width, 1)
        "w_out": w_out.T,                                 # (width, dd)
        "b_out": b_out,                                   # (dd, 1)
    }


def ritznet_reference(x, params):
    """Pure-JAX f32 reference matching the torch module."""
    h = jnp.tanh(x @ params["w_in"].T + params["b_in"][:, 0])
    for l in range(params["w_h"].shape[0]):
        h = jnp.tanh(h @ params["w_h"][l].T + params["b_h"][l, :, 0])
    return h @ params["w_out"] + params["b_out"][:, 0]


# --------------------------------------------------------------------------- #
# Self-test
# --------------------------------------------------------------------------- #
if __name__ == "__main__":
    # RitzNet params: d=2 (2D Poisson input), width=32, depth=3, dd=1.
    d, width, depth, dd = 2, 32, 3, 1
    N = 300          # deliberately NOT a multiple of 128 -> exercises pad/slice

    key = jax.random.PRNGKey(0)
    kx, kp = jax.random.split(key)
    x = jax.random.uniform(kx, (N, d), jnp.float32)
    params = init_params(kp, d, width, depth, dd)

    ref = ritznet_reference(x, params)

    # Strict check: f32 MXU + f32 elementwise on every generation.
    out_f32 = jax.block_until_ready(
        ritznet_forward(x, params, ew_dtype=jnp.float32, mxu_dtype=jnp.float32))
    assert out_f32.shape == (N, dd)
    assert jnp.allclose(out_f32, ref, atol=1e-4, rtol=1e-4), "f32 mismatch vs reference"

    # Default fast path: bf16 MXU operands everywhere; bf16 elementwise/tanh
    # on v6e/v7x, f32 elementwise on v5e (auto-gated on the device generation).
    out_fast = jax.block_until_ready(ritznet_forward(x, params))
    assert out_fast.shape == (N, dd)
    assert jnp.allclose(out_fast, ref, atol=5e-2, rtol=5e-2), "fast-path mismatch vs reference"

    print("KERNEL_OK")
</pallas_src>

<mosaic_0001>
module attributes {stable_mosaic.version = 11 : i64} {
  func.func @ritznet_kernel(%arg0: i32, %arg1: memref<2x384xf32, #tpu.memory_space<vmem>>, %arg2: memref<32x2xf32, #tpu.memory_space<vmem>>, %arg3: memref<32x1xf32, #tpu.memory_space<vmem>>, %arg4: memref<3x32x32xf32, #tpu.memory_space<vmem>>, %arg5: memref<3x32x1xf32, #tpu.memory_space<vmem>>, %arg6: memref<32x1xf32, #tpu.memory_space<vmem>>, %arg7: memref<1x1xf32, #tpu.memory_space<vmem>>, %arg8: memref<1x384xf32, #tpu.memory_space<vmem>>) attributes {dimension_semantics = [#tpu.dimension_semantics<parallel>], iteration_bounds = array<i64: 1>, scalar_prefetch = 0 : i64, scratch_operands = 0 : i64, tpu.core_type = #tpu.core_type<tc>, window_params = [{transform_indices = @transform_0, window_bounds = array<i64: 2, 384>}, {pipeline_mode = #tpu.pipeline_mode<synchronous>, transform_indices = @transform_1, window_bounds = array<i64: 32, 2>}, {pipeline_mode = #tpu.pipeline_mode<synchronous>, transform_indices = @transform_2, window_bounds = array<i64: 32, 1>}, {pipeline_mode = #tpu.pipeline_mode<synchronous>, transform_indices = @transform_3, window_bounds = array<i64: 3, 32, 32>}, {pipeline_mode = #tpu.pipeline_mode<synchronous>, transform_indices = @transform_4, window_bounds = array<i64: 3, 32, 1>}, {pipeline_mode = #tpu.pipeline_mode<synchronous>, transform_indices = @transform_5, window_bounds = array<i64: 32, 1>}, {pipeline_mode = #tpu.pipeline_mode<synchronous>, transform_indices = @transform_6, window_bounds = array<i64: 1, 1>}, {transform_indices = @transform_7, window_bounds = array<i64: 1, 384>}]} {
    %c0 = arith.constant 0 : index
    %c0_0 = arith.constant 0 : index
    %0 = vector.load %arg1[%c0, %c0_0] : memref<2x384xf32, #tpu.memory_space<vmem>>, vector<2x384xf32>
    %c0_1 = arith.constant 0 : index
    %c0_2 = arith.constant 0 : index
    %1 = vector.load %arg2[%c0_1, %c0_2] : memref<32x2xf32, #tpu.memory_space<vmem>>, vector<32x1xf32>
    %2 = vector.extract_strided_slice %0 {offsets = [0, 0], sizes = [1, 384], strides = [1, 1]} : vector<2x384xf32> to vector<1x384xf32>
    %3 = vector.broadcast %1 : vector<32x1xf32> to vector<32x384xf32>
    %4 = vector.broadcast %2 : vector<1x384xf32> to vector<32x384xf32>
    %5 = arith.mulf %3, %4 : vector<32x384xf32>
    %c0_3 = arith.constant 0 : index
    %c1 = arith.constant 1 : index
    %6 = vector.load %arg2[%c0_3, %c1] : memref<32x2xf32, #tpu.memory_space<vmem>>, vector<32x1xf32>
    %7 = vector.extract_strided_slice %0 {offsets = [1, 0], sizes = [1, 384], strides = [1, 1]} : vector<2x384xf32> to vector<1x384xf32>
    %8 = vector.broadcast %6 : vector<32x1xf32> to vector<32x384xf32>
    %9 = vector.broadcast %7 : vector<1x384xf32> to vector<32x384xf32>
    %10 = arith.mulf %8, %9 : vector<32x384xf32>
    %11 = arith.addf %5, %10 : vector<32x384xf32>
    %c0_4 = arith.constant 0 : index
    %c0_5 = arith.constant 0 : index
    %12 = vector.load %arg3[%c0_4, %c0_5] : memref<32x1xf32, #tpu.memory_space<vmem>>, vector<32x1xf32>
    %13 = vector.broadcast %12 : vector<32x1xf32> to vector<32x384xf32>
    %14 = arith.addf %11, %13 : vector<32x384xf32>
    %15 = math.tanh %14 : vector<32x384xf32>
    %c0_6 = arith.constant 0 : index
    %c0_7 = arith.constant 0 : index
    %c0_8 = arith.constant 0 : index
    %16 = vector.load %arg4[%c0_6, %c0_7, %c0_8] : memref<3x32x32xf32, #tpu.memory_space<vmem>>, vector<1x32x32xf32>
    %17 = vector.shape_cast %16 : vector<1x32x32xf32> to vector<32x32xf32>
    %cst = arith.constant dense<0.000000e+00> : vector<32x384xf32>
    %18 = tpu.matmul %17, %15, %cst {dimension_numbers = #tpu.dot_dimension_numbers<[1], [0], [0], [1], [0, 0, 1, 1], [], []>} : vector<32x32xf32>, vector<32x384xf32>, vector<32x384xf32> -> vector<32x384xf32>
    %c0_9 = arith.constant 0 : index
    %c0_10 = arith.constant 0 : index
    %c0_11 = arith.constant 0 : index
    %19 = vector.load %arg5[%c0_9, %c0_10, %c0_11] : memref<3x32x1xf32, #tpu.memory_space<vmem>>, vector<1x32x1xf32>
    %20 = vector.shape_cast %19 : vector<1x32x1xf32> to vector<32x1xf32>
    %21 = vector.broadcast %20 : vector<32x1xf32> to vector<32x384xf32>
    %22 = arith.addf %18, %21 : vector<32x384xf32>
    %23 = math.tanh %22 : vector<32x384xf32>
    %c1_12 = arith.constant 1 : index
    %c0_13 = arith.constant 0 : index
    %c0_14 = arith.constant 0 : index
    %24 = vector.load %arg4[%c1_12, %c0_13, %c0_14] : memref<3x32x32xf32, #tpu.memory_space<vmem>>, vector<1x32x32xf32>
    %25 = vector.shape_cast %24 : vector<1x32x32xf32> to vector<32x32xf32>
    %cst_15 = arith.constant dense<0.000000e+00> : vector<32x384xf32>
    %26 = tpu.matmul %25, %23, %cst_15 {dimension_numbers = #tpu.dot_dimension_numbers<[1], [0], [0], [1], [0, 0, 1, 1], [], []>} : vector<32x32xf32>, vector<32x384xf32>, vector<32x384xf32> -> vector<32x384xf32>
    %c1_16 = arith.constant 1 : index
    %c0_17 = arith.constant 0 : index
    %c0_18 = arith.constant 0 : index
    %27 = vector.load %arg5[%c1_16, %c0_17, %c0_18] : memref<3x32x1xf32, #tpu.memory_space<vmem>>, vector<1x32x1xf32>
    %28 = vector.shape_cast %27 : vector<1x32x1xf32> to vector<32x1xf32>
    %29 = vector.broadcast %28 : vector<32x1xf32> to vector<32x384xf32>
    %30 = arith.addf %26, %29 : vector<32x384xf32>
    %31 = math.tanh %30 : vector<32x384xf32>
    %c2 = arith.constant 2 : index
    %c0_19 = arith.constant 0 : index
    %c0_20 = arith.constant 0 : index
    %32 = vector.load %arg4[%c2, %c0_19, %c0_20] : memref<3x32x32xf32, #tpu.memory_space<vmem>>, vector<1x32x32xf32>
    %33 = vector.shape_cast %32 : vector<1x32x32xf32> to vector<32x32xf32>
    %cst_21 = arith.constant dense<0.000000e+00> : vector<32x384xf32>
    %34 = tpu.matmul %33, %31, %cst_21 {dimension_numbers = #tpu.dot_dimension_numbers<[1], [0], [0], [1], [0, 0, 1, 1], [], []>} : vector<32x32xf32>, vector<32x384xf32>, vector<32x384xf32> -> vector<32x384xf32>
    %c2_22 = arith.constant 2 : index
    %c0_23 = arith.constant 0 : index
    %c0_24 = arith.constant 0 : index
    %35 = vector.load %arg5[%c2_22, %c0_23, %c0_24] : memref<3x32x1xf32, #tpu.memory_space<vmem>>, vector<1x32x1xf32>
    %36 = vector.shape_cast %35 : vector<1x32x1xf32> to vector<32x1xf32>
    %37 = vector.broadcast %36 : vector<32x1xf32> to vector<32x384xf32>
    %38 = arith.addf %34, %37 : vector<32x384xf32>
    %39 = math.tanh %38 : vector<32x384xf32>
    %c0_25 = arith.constant 0 : index
    %c0_26 = arith.constant 0 : index
    %40 = vector.load %arg6[%c0_25, %c0_26] : memref<32x1xf32, #tpu.memory_space<vmem>>, vector<32x1xf32>
    %41 = vector.broadcast %40 : vector<32x1xf32> to vector<32x384xf32>
    %42 = arith.mulf %39, %41 : vector<32x384xf32>
    %cst_27 = arith.constant dense<0.000000e+00> : vector<384xf32>
    %43 = vector.multi_reduction <add>, %42, %cst_27 [0] : vector<32x384xf32> to vector<384xf32>
    %44 = vector.shape_cast %43 : vector<384xf32> to vector<1x384xf32>
    %c0_28 = arith.constant 0 : index
    %c0_29 = arith.constant 0 : index
    %45 = vector.load %arg7[%c0_28, %c0_29] : memref<1x1xf32, #tpu.memory_space<vmem>>, vector<1x1xf32>
    %46 = vector.broadcast %45 : vector<1x1xf32> to vector<1x384xf32>
    %47 = arith.addf %44, %46 : vector<1x384xf32>
    %c0_30 = arith.constant 0 : index
    %c0_31 = arith.constant 0 : index
    %48 = vector.load %arg8[%c0_30, %c0_31] : memref<1x384xf32, #tpu.memory_space<vmem>>, vector<1x384xf32>
    tpu.vector_store %arg8[%c0_30, %c0_31], %47 {strides = array<i32>} : memref<1x384xf32, #tpu.memory_space<vmem>>, vector<1x384xf32>,
    return
  }
  func.func @transform_0(%arg0: i32) -> (i32, i32) {
    %c0_i32 = arith.constant 0 : i32
    %c0_i32_0 = arith.constant 0 : i32
    return %c0_i32, %arg0 : i32, i32
  }
  func.func @transform_1(%arg0: i32) -> (i32, i32) {
    %c0_i32 = arith.constant 0 : i32
    %c0_i32_0 = arith.constant 0 : i32
    %c0_i32_1 = arith.constant 0 : i32
    return %c0_i32, %c0_i32_0 : i32, i32
  }
  func.func @transform_2(%arg0: i32) -> (i32, i32) {
    %c0_i32 = arith.constant 0 : i32
    %c0_i32_0 = arith.constant 0 : i32
    %c0_i32_1 = arith.constant 0 : i32
    return %c0_i32, %c0_i32_0 : i32, i32
  }
  func.func @transform_3(%arg0: i32) -> (i32, i32, i32) {
    %c0_i32 = arith.constant 0 : i32
    %c0_i32_0 = arith.constant 0 : i32
    %c0_i32_1 = arith.constant 0 : i32
    %c0_i32_2 = arith.constant 0 : i32
    return %c0_i32, %c0_i32_0, %c0_i32_1 : i32, i32, i32
  }
  func.func @transform_4(%arg0: i32) -> (i32, i32, i32) {
    %c0_i32 = arith.constant 0 : i32
    %c0_i32_0 = arith.constant 0 : i32
    %c0_i32_1 = arith.constant 0 : i32
    %c0_i32_2 = arith.constant 0 : i32
    return %c0_i32, %c0_i32_0, %c0_i32_1 : i32, i32, i32
  }
  func.func @transform_5(%arg0: i32) -> (i32, i32) {
    %c0_i32 = arith.constant 0 : i32
    %c0_i32_0 = arith.constant 0 : i32
    %c0_i32_1 = arith.constant 0 : i32
    return %c0_i32, %c0_i32_0 : i32, i32
  }
  func.func @transform_6(%arg0: i32) -> (i32, i32) {
    %c0_i32 = arith.constant 0 : i32
    %c0_i32_0 = arith.constant 0 : i32
    %c0_i32_1 = arith.constant 0 : i32
    return %c0_i32, %c0_i32_0 : i32, i32
  }
  func.func @transform_7(%arg0: i32) -> (i32, i32) {
    %c0_i32 = arith.constant 0 : i32
    %c0_i32_0 = arith.constant 0 : i32
    return %c0_i32, %arg0 : i32, i32
  }
}

</mosaic_0001>

<llo_original>
// kernel: tpu_custom_call.1
$region0: #{tpu_custom_call.1}
  #allocation0 [shape = 'u32[]', space=smem, size = 0x4, offset = 0x4, fixed_abs, tag = 'smem constant byte address 0x4 - core index']
  #allocation1 [shape = 'u32[72,128]{1,0:T(1,128)}', space=vmem, size = 0x9000, scoped, tag = 'internal scratch']
  #allocation2 [shape = 'f32[1,1]{1,0:T(1,128)S(1)}', space=vmem, size = 0x200, scoped, tag = 'scoped memory for tpu_custom_call.1']
  %s0 = inlined_call_operand.vmem [shape: f32[2,384], index: 0, kind: input, shape index: {}]
  %s1 = inlined_call_operand.vmem [shape: f32[32,2], index: 1, kind: input, shape index: {}]
  %s2 = inlined_call_operand.vmem [shape: f32[32,1], index: 2, kind: input, shape index: {}]
  %s3 = inlined_call_operand.vmem [shape: f32[3,32,32], index: 3, kind: input, shape index: {}]
  %s4 = inlined_call_operand.vmem [shape: f32[3,32,1], index: 4, kind: input, shape index: {}]
  %s5 = inlined_call_operand.vmem [shape: f32[32,1], index: 5, kind: input, shape index: {}]
  %s6 = inlined_call_operand.<no memory space> [shape: f32[1,1], index: 6, kind: input, shape index: {}]
  %s7 = inlined_call_operand.hbm [shape: f32[1,384], index: 7, kind: output, shape index: {}]
  %s8 = sld [smem:[#allocation0]]
  $region38: #{tpu_custom_call.1} parent=0
    _
  %s10 = ssub.s32 1, %s8
  %s11 = scalar_select 0, %s10, %s8
  %v12 = vstv %s6
  %13 = vst [vmem:[#allocation2] sm:$0x1] %v12
  $region1: #{tpu_custom_call.1} parent=0
    #allocation3 [shape = 'u8[1536]{0}', space=vmem, size = 0x800, scoped, tag = 'output window, operand 0, single buffered']
    #allocation4 [shape = 's32[1]{0}', space=sflag, size = 0x4, scoped, tag = 'scoped memory for tpu_custom_call.1']
    %14 = vsyncpa [#allocation4], 0
    // Predicated region
    $region2: #{tpu_custom_call.1} parent=1 // pred_check
      _
    $region3: #{tpu_custom_call.1} parent=1 // pred_check_branch
      %16 = sbr.rel (0) target = $region5
    $region4: #{tpu_custom_call.1} parent=1 // pred_region
      _
    $region5: #{tpu_custom_call.1} parent=1 // pred_fallthru
      _
    // Predicated region
    $region6: #{tpu_custom_call.1} parent=1 // pred_check
      _
    $region7: #{tpu_custom_call.1} parent=1 // pred_check_branch
      %18 = sbr.rel (0) target = $region9
    $region8: #{tpu_custom_call.1} parent=1 // pred_region
      _
    $region9: #{tpu_custom_call.1} parent=1 // pred_fallthru
      _
    // Predicated region
    $region10: #{tpu_custom_call.1} parent=1 // pred_check
      _
    $region11: #{tpu_custom_call.1} parent=1 // pred_check_branch
      %20 = sbr.rel (0) target = $region13
    $region12: #{tpu_custom_call.1} parent=1 // pred_region
      _
    $region13: #{tpu_custom_call.1} parent=1 // pred_fallthru
      _
    // Predicated region
    $region14: #{tpu_custom_call.1} parent=1 // pred_check
      _
    $region15: #{tpu_custom_call.1} parent=1 // pred_check_branch
      %22 = sbr.rel (0) target = $region17
    $region16: #{tpu_custom_call.1} parent=1 // pred_region
      _
    $region17: #{tpu_custom_call.1} parent=1 // pred_fallthru
      _
    // Predicated region
    $region18: #{tpu_custom_call.1} parent=1 // pred_check
      _
    $region19: #{tpu_custom_call.1} parent=1 // pred_check_branch
      %24 = sbr.rel (0) target = $region21
    $region20: #{tpu_custom_call.1} parent=1 // pred_region
      _
    $region21: #{tpu_custom_call.1} parent=1 // pred_fallthru
      _
    // Predicated region
    $region22: #{tpu_custom_call.1} parent=1 // pred_check
      _
    $region23: #{tpu_custom_call.1} parent=1 // pred_check_branch
      %26 = sbr.rel (0) target = $region25
    $region24: #{tpu_custom_call.1} parent=1 // pred_region
      _
    $region25: #{tpu_custom_call.1} parent=1 // pred_fallthru
      _
    // Predicated region
    $region26: #{tpu_custom_call.1} parent=1 // pred_check
      _
    $region27: #{tpu_custom_call.1} parent=1 // pred_check_branch
      %28 = sbr.rel (0) target = $region29
    $region28: #{tpu_custom_call.1} parent=1 // pred_region
      _
    $region29: #{tpu_custom_call.1} parent=1 // pred_fallthru
      _
    %v29 = vld [vmem:[%s0] sm:$0x3f]
    %v30 = vld [vmem:[%s1] sm:$0xff]
    %v31 = vld [vmem:[%s1 + $0x8] sm:$0xff]
    %v32 = vld [vmem:[%s1 + $0x10] sm:$0xff]
    %v33 = vld [vmem:[%s1 + $0x18] sm:$0xff]
    %35 = vset.pattern.permute.xlu0 0
    %36 = vperm.xlu0 %35, %v30
    %v37 = vpop.permute.xlu0 %36
    %40 = vset.pattern.permute.xlu0 0
    %41 = vperm.xlu0 %40, %v31
    %v42 = vpop.permute.xlu0 %41
    %45 = vset.pattern.permute.xlu0 0
    %46 = vperm.xlu0 %45, %v32
    %v47 = vpop.permute.xlu0 %46
    %50 = vset.pattern.permute.xlu0 0
    %51 = vperm.xlu0 %50, %v33
    %v52 = vpop.permute.xlu0 %51
    %v55 = vperm.slane %v29, 0
    %v56 = vperm.slane %v29, 2
    %v57 = vperm.slane %v29, 4
    %v61 = vperm.slane %v55, 0
    %v62 = vperm.slane %v56, 0
    %v63 = vperm.slane %v57, 0
    %v64 = vmul.f32 %v37, %v61
    %v65 = vmul.f32 %v37, %v62
    %v66 = vmul.f32 %v37, %v63
    %v67 = vmul.f32 %v42, %v61
    %v68 = vmul.f32 %v42, %v62
    %v69 = vmul.f32 %v42, %v63
    %v70 = vmul.f32 %v47, %v61
    %v71 = vmul.f32 %v47, %v62
    %v72 = vmul.f32 %v47, %v63
    %v73 = vmul.f32 %v52, %v61
    %v74 = vmul.f32 %v52, %v62
    %v75 = vmul.f32 %v52, %v63
    %76 = vset.pattern.permute.xlu0 1
    %77 = vperm.xlu0 %76, %v30
    %v78 = vpop.permute.xlu0 %77
    %80 = vset.pattern.permute.xlu0 1
    %81 = vperm.xlu0 %80, %v31
    %v82 = vpop.permute.xlu0 %81
    %84 = vset.pattern.permute.xlu0 1
    %85 = vperm.xlu0 %84, %v32
    %v86 = vpop.permute.xlu0 %85
    %88 = vset.pattern.permute.xlu0 1
    %89 = vperm.xlu0 %88, %v33
    %v90 = vpop.permute.xlu0 %89
    %v92 = vperm.slane %v29, 1
    %v93 = vperm.slane %v29, 3
    %v94 = vperm.slane %v29, 5
    %v98 = vperm.slane %v92, 1
    %v99 = vperm.slane %v93, 1
    %v100 = vperm.slane %v94, 1
    %v101 = vmul.f32 %v78, %v98
    %v102 = vmul.f32 %v78, %v99
    %v103 = vmul.f32 %v78, %v100
    %v104 = vmul.f32 %v82, %v98
    %v105 = vmul.f32 %v82, %v99
    %v106 = vmul.f32 %v82, %v100
    %v107 = vmul.f32 %v86, %v98
    %v108 = vmul.f32 %v86, %v99
    %v109 = vmul.f32 %v86, %v100
    %v110 = vmul.f32 %v90, %v98
    %v111 = vmul.f32 %v90, %v99
    %v112 = vmul.f32 %v90, %v100
    %v113 = vadd.f32 %v64, %v101
    %v114 = vadd.f32 %v65, %v102
    %v115 = vadd.f32 %v66, %v103
    %v116 = vadd.f32 %v67, %v104
    %v117 = vadd.f32 %v68, %v105
    %v118 = vadd.f32 %v69, %v106
    %v119 = vadd.f32 %v70, %v107
    %v120 = vadd.f32 %v71, %v108
    %v121 = vadd.f32 %v72, %v109
    %v122 = vadd.f32 %v73, %v110
    %v123 = vadd.f32 %v74, %v111
    %v124 = vadd.f32 %v75, %v112
    %v125 = vld [vmem:[%s2] sm:$0xff]
    %v126 = vld [vmem:[%s2 + $0x8] sm:$0xff]
    %v127 = vld [vmem:[%s2 + $0x10] sm:$0xff]
    %v128 = vld [vmem:[%s2 + $0x18] sm:$0xff]
    %130 = vset.pattern.permute.xlu0 0
    %131 = vperm.xlu0 %130, %v125
    %v132 = vpop.permute.xlu0 %131
    %135 = vset.pattern.permute.xlu0 0
    %136 = vperm.xlu0 %135, %v126
    %v137 = vpop.permute.xlu0 %136
    %140 = vset.pattern.permute.xlu0 0
    %141 = vperm.xlu0 %140, %v127
    %v142 = vpop.permute.xlu0 %141
    %145 = vset.pattern.permute.xlu0 0
    %146 = vperm.xlu0 %145, %v128
    %v147 = vpop.permute.xlu0 %146
    %v149 = vadd.f32 %v113, %v132
    %v150 = vadd.f32 %v114, %v132
    %v151 = vadd.f32 %v115, %v132
    %v152 = vadd.f32 %v116, %v137
    %v153 = vadd.f32 %v117, %v137
    %v154 = vadd.f32 %v118, %v137
    %v155 = vadd.f32 %v119, %v142
    %v156 = vadd.f32 %v120, %v142
    %v157 = vadd.f32 %v121, %v142
    %v158 = vadd.f32 %v122, %v147
    %v159 = vadd.f32 %v123, %v147
    %v160 = vadd.f32 %v124, %v147
    %v161 = vtanh.pop %v149
    %v162 = vtanh.pop %v150
    %v163 = vtanh.pop %v151
    %v164 = vtanh.pop %v152
    %v165 = vtanh.pop %v153
    %v166 = vtanh.pop %v154
    %v167 = vtanh.pop %v155
    %v168 = vtanh.pop %v156
    %v169 = vtanh.pop %v157
    %v170 = vtanh.pop %v158
    %v171 = vtanh.pop %v159
    %v172 = vtanh.pop %v160
    %v173 = vld [vmem:[%s3] sm:$0xff]
    %v174 = vld [vmem:[%s3 + $0x8] sm:$0xff]
    %v175 = vld [vmem:[%s3 + $0x10] sm:$0xff]
    %v176 = vld [vmem:[%s3 + $0x18] sm:$0xff]
    %v177 = vld [vmem:[%s4] sm:$0xff]
    %v178 = vld [vmem:[%s4 + $0x8] sm:$0xff]
    %v179 = vld [vmem:[%s4 + $0x10] sm:$0xff]
    %v180 = vld [vmem:[%s4 + $0x18] sm:$0xff]
    %182 = vset.pattern.permute.xlu0 0
    %183 = vperm.xlu0 %182, %v177
    %v184 = vpop.permute.xlu0 %183
    %187 = vset.pattern.permute.xlu0 0
    %188 = vperm.xlu0 %187, %v178
    %v189 = vpop.permute.xlu0 %188
    %192 = vset.pattern.permute.xlu0 0
    %193 = vperm.xlu0 %192, %v179
    %v194 = vpop.permute.xlu0 %193
    %197 = vset.pattern.permute.xlu0 0
    %198 = vperm.xlu0 %197, %v180
    %v199 = vpop.permute.xlu0 %198
    %vm201 = vcmask 261120
    %v203 = vsel %vm201, %v173, 0
    %v206 = vsel %vm201, %v174, 0
    %v209 = vsel %vm201, %v175, 0
    %v212 = vsel %vm201, %v176, 0
    %214 = vmatpush.msra.mxu0 0.0
    %215 = vmatpush.msra.mxu0 0.0
    %216 = vmatpush.msra.mxu0 0.0
    %217 = vmatpush.msra.mxu0 0.0
    %218 = vmatpush.msra.mxu0 0.0
    %219 = vmatpush.msra.mxu0 0.0
    %220 = vmatpush.msra.mxu0 0.0
    %221 = vmatpush.msra.mxu0 0.0
    %222 = vmatpush.msra.mxu0 0.0
    %223 = vmatpush.msra.mxu0 0.0
    %224 = vmatpush.msra.mxu0 0.0
    %225 = vmatpush.msra.mxu0 0.0
    %226 = vmatpush.msra.mxu0 %v170
    %227 = vmatpush.msra.mxu0 %v167
    %228 = vmatpush.msra.mxu0 %v164
    %229 = vmatpush.msra.mxu0 %v161
    %230 = vmatmul.f32.gmra.mxu0 %v203
    %v231 = vpop.f32.mrf.mxu0
    %v232 = vadd.f32 %v184, %v231
    %233 = vmatmul.f32.gmra.mxu0 %v206
    %v234 = vpop.f32.mrf.mxu0
    %v235 = vadd.f32 %v189, %v234
    %236 = vmatmul.f32.gmra.mxu0 %v209
    %v237 = vpop.f32.mrf.mxu0
    %v238 = vadd.f32 %v194, %v237
    %239 = vmatmul.f32.gmra.mxu0 %v212
    %v240 = vpop.f32.mrf.mxu0
    %v241 = vadd.f32 %v199, %v240
    %242 = vdwg.mxu0
    %243 = vmatpush.msra.mxu0 0.0
    %244 = vmatpush.msra.mxu0 0.0
    %245 = vmatpush.msra.mxu0 0.0
    %246 = vmatpush.msra.mxu0 0.0
    %247 = vmatpush.msra.mxu0 0.0
    %248 = vmatpush.msra.mxu0 0.0
    %249 = vmatpush.msra.mxu0 0.0
    %250 = vmatpush.msra.mxu0 0.0
    %251 = vmatpush.msra.mxu0 0.0
    %252 = vmatpush.msra.mxu0 0.0
    %253 = vmatpush.msra.mxu0 0.0
    %254 = vmatpush.msra.mxu0 0.0
    %255 = vmatpush.msra.mxu0 %v171
    %256 = vmatpush.msra.mxu0 %v168
    %257 = vmatpush.msra.mxu0 %v165
    %258 = vmatpush.msra.mxu0 %v162
    %259 = vmatmul.f32.gmra.mxu0 %v203
    %v260 = vpop.f32.mrf.mxu0
    %v261 = vadd.f32 %v184, %v260
    %262 = vmatmul.f32.gmra.mxu0 %v206
    %v263 = vpop.f32.mrf.mxu0
    %v264 = vadd.f32 %v189, %v263
    %265 = vmatmul.f32.gmra.mxu0 %v209
    %v266 = vpop.f32.mrf.mxu0
    %v267 = vadd.f32 %v194, %v266
    %268 = vmatmul.f32.gmra.mxu0 %v212
    %v269 = vpop.f32.mrf.mxu0
    %v270 = vadd.f32 %v199, %v269
    %271 = vdwg.mxu0
    %272 = vmatpush.msra.mxu0 0.0
    %273 = vmatpush.msra.mxu0 0.0
    %274 = vmatpush.msra.mxu0 0.0
    %275 = vmatpush.msra.mxu0 0.0
    %276 = vmatpush.msra.mxu0 0.0
    %277 = vmatpush.msra.mxu0 0.0
    %278 = vmatpush.msra.mxu0 0.0
    %279 = vmatpush.msra.mxu0 0.0
    %280 = vmatpush.msra.mxu0 0.0
    %281 = vmatpush.msra.mxu0 0.0
    %282 = vmatpush.msra.mxu0 0.0
    %283 = vmatpush.msra.mxu0 0.0
    %284 = vmatpush.msra.mxu0 %v172
    %285 = vmatpush.msra.mxu0 %v169
    %286 = vmatpush.msra.mxu0 %v166
    %287 = vmatpush.msra.mxu0 %v163
    %288 = vmatmul.f32.gmra.mxu0 %v203
    %v289 = vpop.f32.mrf.mxu0
    %v290 = vadd.f32 %v184, %v289
    %291 = vmatmul.f32.gmra.mxu0 %v206
    %v292 = vpop.f32.mrf.mxu0
    %v293 = vadd.f32 %v189, %v292
    %294 = vmatmul.f32.gmra.mxu0 %v209
    %v295 = vpop.f32.mrf.mxu0
    %v296 = vadd.f32 %v194, %v295
    %297 = vmatmul.f32.gmra.mxu0 %v212
    %v298 = vpop.f32.mrf.mxu0
    %v299 = vadd.f32 %v199, %v298
    %300 = vdwg.mxu0
    %v301 = vtanh.pop %v232
    %v302 = vtanh.pop %v261
    %v303 = vtanh.pop %v290
    %v304 = vtanh.pop %v235
    %v305 = vtanh.pop %v264
    %v306 = vtanh.pop %v293
    %v307 = vtanh.pop %v238
    %v308 = vtanh.pop %v267
    %v309 = vtanh.pop %v296
    %v310 = vtanh.pop %v241
    %v311 = vtanh.pop %v270
    %v312 = vtanh.pop %v299
    %s313 = scalar_lea.vmem %s3, 32
    %v314 = vld [vmem:[%s313] sm:$0xff]
    %v315 = vld [vmem:[%s313 + $0x8] sm:$0xff]
    %v316 = vld [vmem:[%s313 + $0x10] sm:$0xff]
    %v317 = vld [vmem:[%s313 + $0x18] sm:$0xff]
    %s318 = scalar_lea.vmem %s4, 32
    %v319 = vld [vmem:[%s318] sm:$0xff]
    %v320 = vld [vmem:[%s318 + $0x8] sm:$0xff]
    %v321 = vld [vmem:[%s318 + $0x10] sm:$0xff]
    %v322 = vld [vmem:[%s318 + $0x18] sm:$0xff]
    %324 = vset.pattern.permute.xlu0 0
    %325 = vperm.xlu0 %324, %v319
    %v326 = vpop.permute.xlu0 %325
    %329 = vset.pattern.permute.xlu0 0
    %330 = vperm.xlu0 %329, %v320
    %v331 = vpop.permute.xlu0 %330
    %334 = vset.pattern.permute.xlu0 0
    %335 = vperm.xlu0 %334, %v321
    %v336 = vpop.permute.xlu0 %335
    %339 = vset.pattern.permute.xlu0 0
    %340 = vperm.xlu0 %339, %v322
    %v341 = vpop.permute.xlu0 %340
    %v344 = vsel %vm201, %v314, 0
    %v347 = vsel %vm201, %v315, 0
    %v350 = vsel %vm201, %v316, 0
    %v353 = vsel %vm201, %v317, 0
    %355 = vmatpush.msra.mxu0 0.0
    %356 = vmatpush.msra.mxu0 0.0
    %357 = vmatpush.msra.mxu0 0.0
    %358 = vmatpush.msra.mxu0 0.0
    %359 = vmatpush.msra.mxu0 0.0
    %360 = vmatpush.msra.mxu0 0.0
    %361 = vmatpush.msra.mxu0 0.0
    %362 = vmatpush.msra.mxu0 0.0
    %363 = vmatpush.msra.mxu0 0.0
    %364 = vmatpush.msra.mxu0 0.0
    %365 = vmatpush.msra.mxu0 0.0
    %366 = vmatpush.msra.mxu0 0.0
    %367 = vmatpush.msra.mxu0 %v310
    %368 = vmatpush.msra.mxu0 %v307
    %369 = vmatpush.msra.mxu0 %v304
    %370 = vmatpush.msra.mxu0 %v301
    %371 = vmatmul.f32.gmra.mxu0 %v344
    %v372 = vpop.f32.mrf.mxu0
    %v373 = vadd.f32 %v326, %v372
    %374 = vmatmul.f32.gmra.mxu0 %v347
    %v375 = vpop.f32.mrf.mxu0
    %v376 = vadd.f32 %v331, %v375
    %377 = vmatmul.f32.gmra.mxu0 %v350
    %v378 = vpop.f32.mrf.mxu0
    %v379 = vadd.f32 %v336, %v378
    %380 = vmatmul.f32.gmra.mxu0 %v353
    %v381 = vpop.f32.mrf.mxu0
    %v382 = vadd.f32 %v341, %v381
    %383 = vdwg.mxu0
    %384 = vmatpush.msra.mxu0 0.0
    %385 = vmatpush.msra.mxu0 0.0
    %386 = vmatpush.msra.mxu0 0.0
    %387 = vmatpush.msra.mxu0 0.0
    %388 = vmatpush.msra.mxu0 0.0
    %389 = vmatpush.msra.mxu0 0.0
    %390 = vmatpush.msra.mxu0 0.0
    %391 = vmatpush.msra.mxu0 0.0
    %392 = vmatpush.msra.mxu0 0.0
    %393 = vmatpush.msra.mxu0 0.0
    %394 = vmatpush.msra.mxu0 0.0
    %395 = vmatpush.msra.mxu0 0.0
    %396 = vmatpush.msra.mxu0 %v311
    %397 = vmatpush.msra.mxu0 %v308
    %398 = vmatpush.msra.mxu0 %v305
    %399 = vmatpush.msra.mxu0 %v302
    %400 = vmatmul.f32.gmra.mxu0 %v344
    %v401 = vpop.f32.mrf.mxu0
    %v402 = vadd.f32 %v326, %v401
    %403 = vmatmul.f32.gmra.mxu0 %v347
    %v404 = vpop.f32.mrf.mxu0
    %v405 = vadd.f32 %v331, %v404
    %406 = vmatmul.f32.gmra.mxu0 %v350
    %v407 = vpop.f32.mrf.mxu0
    %v408 = vadd.f32 %v336, %v407
    %409 = vmatmul.f32.gmra.mxu0 %v353
    %v410 = vpop.f32.mrf.mxu0
    %v411 = vadd.f32 %v341, %v410
    %412 = vdwg.mxu0
    %413 = vmatpush.msra.mxu0 0.0
    %414 = vmatpush.msra.mxu0 0.0
    %415 = vmatpush.msra.mxu0 0.0
    %416 = vmatpush.msra.mxu0 0.0
    %417 = vmatpush.msra.mxu0 0.0
    %418 = vmatpush.msra.mxu0 0.0
    %419 = vmatpush.msra.mxu0 0.0
    %420 = vmatpush.msra.mxu0 0.0
    %421 = vmatpush.msra.mxu0 0.0
    %422 = vmatpush.msra.mxu0 0.0
    %423 = vmatpush.msra.mxu0 0.0
    %424 = vmatpush.msra.mxu0 0.0
    %425 = vmatpush.msra.mxu0 %v312
    %426 = vmatpush.msra.mxu0 %v309
    %427 = vmatpush.msra.mxu0 %v306
    %428 = vmatpush.msra.mxu0 %v303
    %429 = vmatmul.f32.gmra.mxu0 %v344
    %v430 = vpop.f32.mrf.mxu0
    %v431 = vadd.f32 %v326, %v430
    %432 = vmatmul.f32.gmra.mxu0 %v347
    %v433 = vpop.f32.mrf.mxu0
    %v434 = vadd.f32 %v331, %v433
    %435 = vmatmul.f32.gmra.mxu0 %v350
    %v436 = vpop.f32.mrf.mxu0
    %v437 = vadd.f32 %v336, %v436
    %438 = vmatmul.f32.gmra.mxu0 %v353
    %v439 = vpop.f32.mrf.mxu0
    %v440 = vadd.f32 %v341, %v439
    %441 = vdwg.mxu0
    %v442 = vtanh.pop %v373
    %v443 = vtanh.pop %v402
    %v444 = vtanh.pop %v431
    %v445 = vtanh.pop %v376
    %v446 = vtanh.pop %v405
    %v447 = vtanh.pop %v434
    %v448 = vtanh.pop %v379
    %v449 = vtanh.pop %v408
    %v450 = vtanh.pop %v437
    %v451 = vtanh.pop %v382
    %v452 = vtanh.pop %v411
    %v453 = vtanh.pop %v440
    %s454 = scalar_lea.vmem %s3, 64
    %v455 = vld [vmem:[%s454] sm:$0xff]
    %v456 = vld [vmem:[%s454 + $0x8] sm:$0xff]
    %v457 = vld [vmem:[%s454 + $0x10] sm:$0xff]
    %v458 = vld [vmem:[%s454 + $0x18] sm:$0xff]
    %s459 = scalar_lea.vmem %s4, 64
    %v460 = vld [vmem:[%s459] sm:$0xff]
    %v461 = vld [vmem:[%s459 + $0x8] sm:$0xff]
    %v462 = vld [vmem:[%s459 + $0x10] sm:$0xff]
    %v463 = vld [vmem:[%s459 + $0x18] sm:$0xff]
    %465 = vset.pattern.permute.xlu0 0
    %466 = vperm.xlu0 %465, %v460
    %v467 = vpop.permute.xlu0 %466
    %470 = vset.pattern.permute.xlu0 0
    %471 = vperm.xlu0 %470, %v461
    %v472 = vpop.permute.xlu0 %471
    %475 = vset.pattern.permute.xlu0 0
    %476 = vperm.xlu0 %475, %v462
    %v477 = vpop.permute.xlu0 %476
    %480 = vset.pattern.permute.xlu0 0
    %481 = vperm.xlu0 %480, %v463
    %v482 = vpop.permute.xlu0 %481
    %v485 = vsel %vm201, %v455, 0
    %v488 = vsel %vm201, %v456, 0
    %v491 = vsel %vm201, %v457, 0
    %v494 = vsel %vm201, %v458, 0
    %496 = vmatpush.msra.mxu0 0.0
    %497 = vmatpush.msra.mxu0 0.0
    %498 = vmatpush.msra.mxu0 0.0
    %499 = vmatpush.msra.mxu0 0.0
    %500 = vmatpush.msra.mxu0 0.0
    %501 = vmatpush.msra.mxu0 0.0
    %502 = vmatpush.msra.mxu0 0.0
    %503 = vmatpush.msra.mxu0 0.0
    %504 = vmatpush.msra.mxu0 0.0
    %505 = vmatpush.msra.mxu0 0.0
    %506 = vmatpush.msra.mxu0 0.0
    %507 = vmatpush.msra.mxu0 0.0
    %508 = vmatpush.msra.mxu0 %v451
    %509 = vmatpush.msra.mxu0 %v448
    %510 = vmatpush.msra.mxu0 %v445
    %511 = vmatpush.msra.mxu0 %v442
    %512 = vmatmul.f32.gmra.mxu0 %v485
    %v513 = vpop.f32.mrf.mxu0
    %v514 = vadd.f32 %v467, %v513
    %515 = vmatmul.f32.gmra.mxu0 %v488
    %v516 = vpop.f32.mrf.mxu0
    %v517 = vadd.f32 %v472, %v516
    %518 = vmatmul.f32.gmra.mxu0 %v491
    %v519 = vpop.f32.mrf.mxu0
    %v520 = vadd.f32 %v477, %v519
    %521 = vmatmul.f32.gmra.mxu0 %v494
    %v522 = vpop.f32.mrf.mxu0
    %v523 = vadd.f32 %v482, %v522
    %524 = vdwg.mxu0
    %525 = vmatpush.msra.mxu0 0.0
    %526 = vmatpush.msra.mxu0 0.0
    %527 = vmatpush.msra.mxu0 0.0
    %528 = vmatpush.msra.mxu0 0.0
    %529 = vmatpush.msra.mxu0 0.0
    %530 = vmatpush.msra.mxu0 0.0
    %531 = vmatpush.msra.mxu0 0.0
    %532 = vmatpush.msra.mxu0 0.0
    %533 = vmatpush.msra.mxu0 0.0
    %534 = vmatpush.msra.mxu0 0.0
    %535 = vmatpush.msra.mxu0 0.0
    %536 = vmatpush.msra.mxu0 0.0
    %537 = vmatpush.msra.mxu0 %v452
    %538 = vmatpush.msra.mxu0 %v449
    %539 = vmatpush.msra.mxu0 %v446
    %540 = vmatpush.msra.mxu0 %v443
    %541 = vmatmul.f32.gmra.mxu0 %v485
    %v542 = vpop.f32.mrf.mxu0
    %v543 = vadd.f32 %v467, %v542
    %544 = vmatmul.f32.gmra.mxu0 %v488
    %v545 = vpop.f32.mrf.mxu0
    %v546 = vadd.f32 %v472, %v545
    %547 = vmatmul.f32.gmra.mxu0 %v491
    %v548 = vpop.f32.mrf.mxu0
    %v549 = vadd.f32 %v477, %v548
    %550 = vmatmul.f32.gmra.mxu0 %v494
    %v551 = vpop.f32.mrf.mxu0
    %v552 = vadd.f32 %v482, %v551
    %553 = vdwg.mxu0
    %554 = vmatpush.msra.mxu0 0.0
    %555 = vmatpush.msra.mxu0 0.0
    %556 = vmatpush.msra.mxu0 0.0
    %557 = vmatpush.msra.mxu0 0.0
    %558 = vmatpush.msra.mxu0 0.0
    %559 = vmatpush.msra.mxu0 0.0
    %560 = vmatpush.msra.mxu0 0.0
    %561 = vmatpush.msra.mxu0 0.0
    %562 = vmatpush.msra.mxu0 0.0
    %563 = vmatpush.msra.mxu0 0.0
    %564 = vmatpush.msra.mxu0 0.0
    %565 = vmatpush.msra.mxu0 0.0
    %566 = vmatpush.msra.mxu0 %v453
    %567 = vmatpush.msra.mxu0 %v450
    %568 = vmatpush.msra.mxu0 %v447
    %569 = vmatpush.msra.mxu0 %v444
    %570 = vmatmul.f32.gmra.mxu0 %v485
    %v571 = vpop.f32.mrf.mxu0
    %v572 = vadd.f32 %v467, %v571
    %573 = vmatmul.f32.gmra.mxu0 %v488
    %v574 = vpop.f32.mrf.mxu0
    %v575 = vadd.f32 %v472, %v574
    %576 = vmatmul.f32.gmra.mxu0 %v491
    %v577 = vpop.f32.mrf.mxu0
    %v578 = vadd.f32 %v477, %v577
    %579 = vmatmul.f32.gmra.mxu0 %v494
    %v580 = vpop.f32.mrf.mxu0
    %v581 = vadd.f32 %v482, %v580
    %582 = vdwg.mxu0
    %v583 = vtanh.pop %v514
    %v584 = vtanh.pop %v543
    %v585 = vtanh.pop %v572
    %v586 = vtanh.pop %v517
    %v587 = vtanh.pop %v546
    %v588 = vtanh.pop %v575
    %v589 = vtanh.pop %v520
    %v590 = vtanh.pop %v549
    %v591 = vtanh.pop %v578
    %v592 = vtanh.pop %v523
    %v593 = vtanh.pop %v552
    %v594 = vtanh.pop %v581
    %v595 = vld [vmem:[%s5] sm:$0xff]
    %v596 = vld [vmem:[%s5 + $0x8] sm:$0xff]
    %v597 = vld [vmem:[%s5 + $0x10] sm:$0xff]
    %v598 = vld [vmem:[%s5 + $0x18] sm:$0xff]
    %600 = vset.pattern.permute.xlu0 0
    %601 = vperm.xlu0 %600, %v595
    %v602 = vpop.permute.xlu0 %601
    %605 = vset.pattern.permute.xlu0 0
    %606 = vperm.xlu0 %605, %v596
    %v607 = vpop.permute.xlu0 %606
    %610 = vset.pattern.permute.xlu0 0
    %611 = vperm.xlu0 %610, %v597
    %v612 = vpop.permute.xlu0 %611
    %615 = vset.pattern.permute.xlu0 0
    %616 = vperm.xlu0 %615, %v598
    %v617 = vpop.permute.xlu0 %616
    %v619 = vmul.f32 %v583, %v602
    %v620 = vmul.f32 %v584, %v602
    %v621 = vmul.f32 %v585, %v602
    %v622 = vmul.f32 %v586, %v607
    %v623 = vmul.f32 %v587, %v607
    %v624 = vmul.f32 %v588, %v607
    %v625 = vmul.f32 %v589, %v612
    %v626 = vmul.f32 %v590, %v612
    %v627 = vmul.f32 %v591, %v612
    %v628 = vmul.f32 %v592, %v617
    %v629 = vmul.f32 %v593, %v617
    %v630 = vmul.f32 %v594, %v617
    %v631 = vadd.f32 %v619, %v622
    %v632 = vadd.f32 %v631, %v625
    %v633 = vadd.f32 %v632, %v628
    %v634 = vrot.slane %v633, 4
    %v635 = vadd.f32 %v633, %v634
    %v636 = vrot.slane %v635, 2
    %v637 = vadd.f32 %v635, %v636
    %v638 = vrot.slane %v637, 1
    %v639 = vadd.f32 %v637, %v638
    %v640 = vadd.f32 %v620, %v623
    %v641 = vadd.f32 %v640, %v626
    %v642 = vadd.f32 %v641, %v629
    %v643 = vrot.slane %v642, 4
    %v644 = vadd.f32 %v642, %v643
    %v645 = vrot.slane %v644, 2
    %v646 = vadd.f32 %v644, %v645
    %v647 = vrot.slane %v646, 1
    %v648 = vadd.f32 %v646, %v647
    %v649 = vadd.f32 %v621, %v624
    %v650 = vadd.f32 %v649, %v627
    %v651 = vadd.f32 %v650, %v630
    %v652 = vrot.slane %v651, 4
    %v653 = vadd.f32 %v651, %v652
    %v654 = vrot.slane %v653, 2
    %v655 = vadd.f32 %v653, %v654
    %v656 = vrot.slane %v655, 1
    %v657 = vadd.f32 %v655, %v656
    %v658 = vld [vmem:[#allocation2] sm:$0x1]
    %660 = vset.pattern.permute.xlu0 0
    %661 = vperm.xlu0 %660, %v658
    %v662 = vpop.permute.xlu0 %661
    %v664 = vperm.slane %v662, 0
    %v665 = vadd.f32 %v639, %v664
    %v666 = vadd.f32 %v648, %v664
    %v667 = vadd.f32 %v657, %v664
    %v671 = vrot.slane %v666, 7
    %v672 = vrot.slane %v667, 6
    %vm673 = vcmask 1040384
    %v674 = vsel %vm673, %v665, %v671
    %vm675 = vcmask 1041408
    %v676 = vsel %vm675, %v674, %v672
    %v678 = vlaneseq
    %vm679 = vcmp.ge.s32.totalorder %v678, 0
    %vm680 = vcmp.lt.s32.totalorder %v678, 384
    %vm681 = vmand %vm679, %vm680
    %682 = vst.msk [vmem:[#allocation3] sm:$0x7] %vm681, %v676
    // Predicated region
    $region30: #{tpu_custom_call.1} parent=1 // pred_check
      _
    $region31: #{tpu_custom_call.1} parent=1 // pred_check_branch
      %684 = sbr.rel (0) target = $region33
    $region32: #{tpu_custom_call.1} parent=1 // pred_region
      %686 = vsyncadd [#allocation4], 0
      %s688 = sshll.u32 [#allocation3], 4
      %s689 = int_to_ptr.vmem [resolvable:$true] %s688
      %s690 = sshll.u32 %s7, 4
      %s691 = int_to_ptr.hbm [resolvable:$true] %s690
      %693 = dma.vmem_to_hbm [thread:$0]  %s689, 48, %s691, [#allocation4]
    $region33: #{tpu_custom_call.1} parent=1 // pred_fallthru
      _
    // Predicated region
    $region34: #{tpu_custom_call.1} parent=1 // pred_check
      _
    $region35: #{tpu_custom_call.1} parent=1 // pred_check_branch
      %695 = sbr.rel (0) target = $region37
    $region36: #{tpu_custom_call.1} parent=1 // pred_region
      %697 = dma.done [#allocation4], 48
    $region37: #{tpu_custom_call.1} parent=1 // pred_fallthru
      _
    %698 = vsyncpa [#allocation4], 1

</llo_original>
